<compile_context>
chip_gen: v7x
topology: tpu7x:2x2x1
jax: 0.10.0
libtpu: 0.0.40
codegen_flags: <defaults>
</compile_context>

<pallas_src>
import functools

import jax
import jax.numpy as jnp
from jax.experimental import pallas as pl
from jax.experimental.pallas import tpu as pltpu


def _round_up(n: int, m: int) -> int:
    return ((n + m - 1) // m) * m


def _cdiv(a: int, b: int) -> int:
    return (a + b - 1) // b


def _vmem_capacity_bytes() -> int:
    """Physical VMEM of the attached TPU; fall back to 64 MiB (v7x-safe)."""
    try:
        return int(pltpu.get_tpu_info().vmem_capacity_bytes)
    except Exception:
        return 64 << 20


_VMEM_MARGIN = 4 << 20  # Mosaic internal scratch / slack


# --------------------------------------------------------------------------- kernels
def _mlp_kernel_fused(x_ref, w1_ref, b1_ref, w2_ref, b2_ref, o_ref, *, compute_dtype):
    """ReLU(x @ W1 + b1) @ W2 + b2 with both weight matrices resident in VMEM."""
    x = x_ref[...].astype(compute_dtype)           # f32 tile -> compute dtype, in-kernel
    h = jnp.dot(x, w1_ref[...], preferred_element_type=jnp.float32)
    h = jnp.maximum(h + b1_ref[...], 0.0)          # f32 bias + ReLU on the VPU
    # When compute_dtype is bf16 the activation is bf16 for the 2nd matmul
    # (full-rate MXU); pass compute_dtype=jnp.float32 for exact f32 numerics.
    y = jnp.dot(h.astype(compute_dtype), w2_ref[...], preferred_element_type=jnp.float32)
    o_ref[...] = (y + b2_ref[...]).astype(o_ref.dtype)


def _mlp_kernel_htiled(x_ref, w1_ref, b1_ref, w2_ref, b2_ref, o_ref, acc_ref, *,
                       compute_dtype):
    """Same MLP with the hidden dim tiled over grid axis 1 (v7x VMEM fallback)."""
    hk = pl.program_id(1)

    @pl.when(hk == 0)
    def _():
        acc_ref[...] = jnp.zeros_like(acc_ref)

    x = x_ref[...].astype(compute_dtype)
    h = jnp.dot(x, w1_ref[...], preferred_element_type=jnp.float32)
    h = jnp.maximum(h + b1_ref[...], 0.0)          # per-chunk ReLU is exact
    acc_ref[...] += jnp.dot(h.astype(compute_dtype), w2_ref[...],
                            preferred_element_type=jnp.float32)

    @pl.when(hk == pl.num_programs(1) - 1)
    def _():
        o_ref[...] = (acc_ref[...] + b2_ref[...]).astype(o_ref.dtype)


# --------------------------------------------------------------------------- VMEM model
def _fused_vmem_bytes(bm, d_pad, h_pad, o_pad, xb, cdb):
    return (2 * bm * d_pad * xb            # x tile (double buffered, input dtype)
            + d_pad * h_pad * cdb          # W1 resident (Buffered(1))
            + h_pad * 4                    # b1 (Buffered(1), f32)
            + h_pad * o_pad * cdb          # W2 resident (Buffered(1))
            + o_pad * 4                    # b2
            + 2 * bm * o_pad * 4           # f32 out tile (double buffered)
            + bm * h_pad * (4 + cdb)       # hidden intermediate: f32 + cast copy
            + bm * d_pad * cdb)            # in-kernel cast copy of x


def _tiled_vmem_bytes(bm, d_pad, h_blk, o_pad, xb, cdb):
    return (2 * bm * d_pad * xb
            + 2 * d_pad * h_blk * cdb      # W1 chunk (double buffered)
            + 2 * h_blk * 4                # b1 chunk
            + 2 * h_blk * o_pad * cdb      # W2 chunk (double buffered)
            + o_pad * 4                    # b2 (Buffered(1))
            + 2 * bm * o_pad * 4           # f32 out tile
            + bm * o_pad * 4               # f32 accumulator scratch
            + bm * h_blk * (4 + cdb)       # hidden chunk intermediate
            + bm * d_pad * cdb)


# --------------------------------------------------------------------------- wrapper
@functools.partial(jax.jit, static_argnames=("out_dim", "block_m"))
def _projector_padded(x, w1p, b1p, w2p, b2p, *, out_dim, block_m=None):
    """x: (B, T, D); weights already 128-padded and cast to the compute dtype."""
    b, t, d = x.shape
    m = b * t
    d_pad, h_pad = w1p.shape
    o_pad = w2p.shape[1]
    compute_dtype = w1p.dtype
    cdb = jnp.dtype(compute_dtype).itemsize
    xb = jnp.dtype(x.dtype).itemsize

    vmem_phys = _vmem_capacity_bytes()
    vmem_cap = int(0.75 * vmem_phys)       # ~48 MiB on v7x, ~96 MiB on v5e/v6e
    if block_m is None:
        block_m = 512 if vmem_phys >= (100 << 20) else 256

    # --- M tiling: balance tiles (minimize tail zero-padding), multiples of
    # 128 (MXU / bf16 sublane packing), and >= 2 grid steps when m > 128 so
    # both v7x TensorCores get work under ("parallel", ...).
    n_m = max(1, _cdiv(m, block_m))
    if n_m == 1 and m > 128:
        n_m = 2
    bm = max(128, _round_up(_cdiv(m, n_m), 128))

    # --- Pick the fused path when both weights fit the VMEM budget, otherwise
    # tile the hidden dim; shrink the M tile as a last resort.
    plan = None
    for bm_try in [bm] + [v for v in (256, 128) if v < bm]:
        if _fused_vmem_bytes(bm_try, d_pad, h_pad, o_pad, xb, cdb) + _VMEM_MARGIN <= vmem_cap:
            plan = ("fused", bm_try, h_pad, 1)
            break
        for grid_h in range(2, 65):
            h_blk = _round_up(_cdiv(h_pad, grid_h), 128)
            if _tiled_vmem_bytes(bm_try, d_pad, h_blk, o_pad, xb, cdb) + _VMEM_MARGIN <= vmem_cap:
                plan = ("tiled", bm_try, h_blk, grid_h)
                break
        if plan is not None:
            break
    if plan is None:  # best effort: most aggressive tiling we model
        plan = ("tiled", 128, 128, _cdiv(h_pad, 128))
    mode, bm, h_blk, grid_h = plan

    grid_m = max(1, _cdiv(m, bm))
    m_pad = grid_m * bm

    # --- Per-call x prep: reshape + (rare) zero-pad.  The dtype cast happens
    # inside the kernel, so there is no extra HBM cast pre-pass for x.
    x2d = x.reshape(m, d)
    if (m_pad != m) or (d_pad != d):
        x2d = jnp.pad(x2d, ((0, m_pad - m), (0, d_pad - d)))

    # Rare extra hidden padding when h_blk * grid_h > 128-padded hidden.
    h_tot = h_blk * grid_h
    if h_tot != h_pad:
        w1p = jnp.pad(w1p, ((0, 0), (0, h_tot - h_pad)))
        w2p = jnp.pad(w2p, ((0, h_tot - h_pad), (0, 0)))
        b1p = jnp.pad(b1p, ((0, 0), (0, h_tot - h_pad)))

    flops = 2 * m_pad * (d_pad * h_tot + h_tot * o_pad)
    bytes_accessed = (m_pad * d_pad * xb + d_pad * h_tot * cdb
                      + h_tot * o_pad * cdb + (h_tot + o_pad) * 4
                      + m_pad * o_pad * 4)
    cost = pl.CostEstimate(flops=flops, transcendentals=0,
                           bytes_accessed=bytes_accessed)

    if mode == "fused":
        vmem_needed = _fused_vmem_bytes(bm, d_pad, h_tot, o_pad, xb, cdb)
        vmem_limit = int(min(max(vmem_needed + _VMEM_MARGIN, 32 << 20), vmem_cap))
        resident = dict(pipeline_mode=pl.Buffered(1))   # constant blocks: 1 buffer
        out2d = pl.pallas_call(
            functools.partial(_mlp_kernel_fused, compute_dtype=compute_dtype),
            out_shape=jax.ShapeDtypeStruct((m_pad, o_pad), jnp.float32),
            grid_spec=pltpu.PrefetchScalarGridSpec(
                num_scalar_prefetch=0,
                grid=(grid_m,),
                in_specs=[
                    pl.BlockSpec((bm, d_pad), lambda i: (i, 0)),            # x rows
                    pl.BlockSpec((d_pad, h_tot), lambda i: (0, 0), **resident),  # W1
                    pl.BlockSpec((1, h_tot), lambda i: (0, 0), **resident),      # b1
                    pl.BlockSpec((h_tot, o_pad), lambda i: (0, 0), **resident),  # W2
                    pl.BlockSpec((1, o_pad), lambda i: (0, 0), **resident),      # b2
                ],
                out_specs=pl.BlockSpec((bm, o_pad), lambda i: (i, 0)),
            ),
            compiler_params=pltpu.CompilerParams(
                dimension_semantics=("parallel",),
                vmem_limit_bytes=vmem_limit,
            ),
            cost_estimate=cost,
        )(x2d, w1p, b1p, w2p, b2p)
    else:
        vmem_needed = _tiled_vmem_bytes(bm, d_pad, h_blk, o_pad, xb, cdb)
        vmem_limit = int(min(max(vmem_needed + _VMEM_MARGIN, 32 << 20), vmem_cap))
        out2d = pl.pallas_call(
            functools.partial(_mlp_kernel_htiled, compute_dtype=compute_dtype),
            out_shape=jax.ShapeDtypeStruct((m_pad, o_pad), jnp.float32),
            grid_spec=pltpu.PrefetchScalarGridSpec(
                num_scalar_prefetch=0,
                grid=(grid_m, grid_h),
                in_specs=[
                    pl.BlockSpec((bm, d_pad), lambda i, k: (i, 0)),      # x rows
                    pl.BlockSpec((d_pad, h_blk), lambda i, k: (0, k)),   # W1 chunk
                    pl.BlockSpec((1, h_blk), lambda i, k: (0, k)),       # b1 chunk
                    pl.BlockSpec((h_blk, o_pad), lambda i, k: (k, 0)),   # W2 chunk
                    pl.BlockSpec((1, o_pad), lambda i, k: (0, 0),
                                 pipeline_mode=pl.Buffered(1)),          # b2
                ],
                out_specs=pl.BlockSpec((bm, o_pad), lambda i, k: (i, 0)),
                scratch_shapes=[pltpu.VMEM((bm, o_pad), jnp.float32)],
            ),
            compiler_params=pltpu.CompilerParams(
                dimension_semantics=("parallel", "arbitrary"),
                vmem_limit_bytes=vmem_limit,
            ),
            cost_estimate=cost,
        )(x2d, w1p, b1p, w2p, b2p)

    return out2d[:m, :out_dim].reshape(b, t, out_dim)


def prepare_params(w1, b1, w2, b2, compute_dtype=jnp.bfloat16):
    """Pad feature dims to multiples of 128 and cast the MXU operands to the
    compute dtype ONCE, outside the per-call hot path (zero padding is exact)."""
    d, hidden = int(w1.shape[0]), int(w1.shape[1])
    out_dim = int(w2.shape[1])
    d_pad, h_pad, o_pad = (_round_up(v, 128) for v in (d, hidden, out_dim))
    w1p = jnp.pad(w1, ((0, d_pad - d), (0, h_pad - hidden))).astype(compute_dtype)
    w2p = jnp.pad(w2, ((0, h_pad - hidden), (0, o_pad - out_dim))).astype(compute_dtype)
    b1p = jnp.pad(b1, (0, h_pad - hidden)).reshape(1, h_pad).astype(jnp.float32)
    b2p = jnp.pad(b2, (0, o_pad - out_dim)).reshape(1, o_pad).astype(jnp.float32)
    return (w1p, b1p, w2p, b2p, out_dim)


def linear_projector_prepared(x, prepared, *, block_m=None):
    """Hot-path entry: x (B, T, D) f32 with weights from prepare_params()."""
    w1p, b1p, w2p, b2p, out_dim = prepared
    return _projector_padded(x, w1p, b1p, w2p, b2p, out_dim=out_dim, block_m=block_m)


def linear_projector(x, w1, b1, w2, b2, *, block_m=None, compute_dtype=jnp.bfloat16):
    """One-shot convenience wrapper (re-pads/casts the weights on every call).
    For repeated calls use prepare_params() once + linear_projector_prepared()."""
    return linear_projector_prepared(
        x, prepare_params(w1, b1, w2, b2, compute_dtype), block_m=block_m)


def init_params(key, input_dim, hidden_dim, output_dim):
    """Deterministic init mimicking nn.Linear's U(-1/sqrt(fan_in), 1/sqrt(fan_in))."""
    k1, k2, k3, k4 = jax.random.split(key, 4)
    lim1 = 1.0 / jnp.sqrt(input_dim)
    lim2 = 1.0 / jnp.sqrt(hidden_dim)
    # Stored as (in, out) — transposed w.r.t. PyTorch's (out, in) storage.
    w1 = jax.random.uniform(k1, (input_dim, hidden_dim), jnp.float32, -lim1, lim1)
    b1 = jax.random.uniform(k2, (hidden_dim,), jnp.float32, -lim1, lim1)
    w2 = jax.random.uniform(k3, (hidden_dim, output_dim), jnp.float32, -lim2, lim2)
    b2 = jax.random.uniform(k4, (output_dim,), jnp.float32, -lim2, lim2)
    return w1, b1, w2, b2


if __name__ == "__main__":
    # Small shapes consistent with the module's forward: (B, T, D)
    B, T, D = 2, 8, 32
    HIDDEN, OUT = 64, 48

    key = jax.random.PRNGKey(0)
    kx, kp = jax.random.split(key)
    x = jax.random.normal(kx, (B, T, D), dtype=jnp.float32)
    w1, b1, w2, b2 = init_params(kp, D, HIDDEN, OUT)

    # Pure-JAX f32 reference.
    ref = jnp.maximum(x.reshape(B * T, D) @ w1 + b1, 0.0) @ w2 + b2
    ref = ref.reshape(B, T, OUT)

    # Hot-path style: prepare weights once (bf16 compute), reuse across calls.
    prepared = prepare_params(w1, b1, w2, b2, compute_dtype=jnp.bfloat16)
    out_bf16 = jax.block_until_ready(linear_projector_prepared(x, prepared))
    assert out_bf16.shape == (B, T, OUT)
    assert jnp.allclose(out_bf16, ref, atol=2e-2, rtol=2e-2)

    # Full-f32 compute path — exact (tight tolerance) sanity check.
    out_f32 = jax.block_until_ready(
        linear_projector(x, w1, b1, w2, b2, compute_dtype=jnp.float32))
    assert jnp.allclose(out_f32, ref, atol=1e-5, rtol=1e-5)

    print("KERNEL_OK")
</pallas_src>

<mosaic_0001>
module attributes {stable_mosaic.version = 11 : i64} {
  func.func @_mlp_kernel_fused(%arg0: i32, %arg1: memref<128x128xf32, #tpu.memory_space<vmem>>, %arg2: memref<128x128xbf16, #tpu.memory_space<vmem>>, %arg3: memref<1x128xf32, #tpu.memory_space<vmem>>, %arg4: memref<128x128xbf16, #tpu.memory_space<vmem>>, %arg5: memref<1x128xf32, #tpu.memory_space<vmem>>, %arg6: memref<128x128xf32, #tpu.memory_space<vmem>>) attributes {dimension_semantics = [#tpu.dimension_semantics<parallel>], iteration_bounds = array<i64: 1>, scalar_prefetch = 0 : i64, scratch_operands = 0 : i64, tpu.core_type = #tpu.core_type<tc>, window_params = [{transform_indices = @transform_0, window_bounds = array<i64: 128, 128>}, {pipeline_mode = #tpu.pipeline_mode<synchronous>, transform_indices = @transform_1, window_bounds = array<i64: 128, 128>}, {pipeline_mode = #tpu.pipeline_mode<synchronous>, transform_indices = @transform_2, window_bounds = array<i64: 1, 128>}, {pipeline_mode = #tpu.pipeline_mode<synchronous>, transform_indices = @transform_3, window_bounds = array<i64: 128, 128>}, {pipeline_mode = #tpu.pipeline_mode<synchronous>, transform_indices = @transform_4, window_bounds = array<i64: 1, 128>}, {transform_indices = @transform_5, window_bounds = array<i64: 128, 128>}]} {
    %c0 = arith.constant 0 : index
    %c0_0 = arith.constant 0 : index
    %0 = vector.load %arg1[%c0, %c0_0] : memref<128x128xf32, #tpu.memory_space<vmem>>, vector<128x128xf32>
    %1 = arith.truncf %0 : vector<128x128xf32> to vector<128x128xbf16>
    %c0_1 = arith.constant 0 : index
    %c0_2 = arith.constant 0 : index
    %2 = vector.load %arg2[%c0_1, %c0_2] : memref<128x128xbf16, #tpu.memory_space<vmem>>, vector<128x128xbf16>
    %cst = arith.constant dense<0.000000e+00> : vector<128x128xf32>
    %3 = tpu.matmul %1, %2, %cst {dimension_numbers = #tpu.dot_dimension_numbers<[1], [0], [0], [1], [0, 0, 1, 1], [], []>} : vector<128x128xbf16>, vector<128x128xbf16>, vector<128x128xf32> -> vector<128x128xf32>
    %c0_3 = arith.constant 0 : index
    %c0_4 = arith.constant 0 : index
    %4 = vector.load %arg3[%c0_3, %c0_4] : memref<1x128xf32, #tpu.memory_space<vmem>>, vector<1x128xf32>
    %5 = vector.broadcast %4 : vector<1x128xf32> to vector<128x128xf32>
    %6 = arith.addf %3, %5 : vector<128x128xf32>
    %cst_5 = arith.constant 0.000000e+00 : f32
    %7 = vector.broadcast %cst_5 : f32 to vector<128x128xf32>
    %8 = arith.maximumf %6, %7 : vector<128x128xf32>
    %9 = arith.truncf %8 : vector<128x128xf32> to vector<128x128xbf16>
    %c0_6 = arith.constant 0 : index
    %c0_7 = arith.constant 0 : index
    %10 = vector.load %arg4[%c0_6, %c0_7] : memref<128x128xbf16, #tpu.memory_space<vmem>>, vector<128x128xbf16>
    %cst_8 = arith.constant dense<0.000000e+00> : vector<128x128xf32>
    %11 = tpu.matmul %9, %10, %cst_8 {dimension_numbers = #tpu.dot_dimension_numbers<[1], [0], [0], [1], [0, 0, 1, 1], [], []>} : vector<128x128xbf16>, vector<128x128xbf16>, vector<128x128xf32> -> vector<128x128xf32>
    %c0_9 = arith.constant 0 : index
    %c0_10 = arith.constant 0 : index
    %12 = vector.load %arg5[%c0_9, %c0_10] : memref<1x128xf32, #tpu.memory_space<vmem>>, vector<1x128xf32>
    %13 = vector.broadcast %12 : vector<1x128xf32> to vector<128x128xf32>
    %14 = arith.addf %11, %13 : vector<128x128xf32>
    %c0_11 = arith.constant 0 : index
    %c0_12 = arith.constant 0 : index
    %15 = vector.load %arg6[%c0_11, %c0_12] : memref<128x128xf32, #tpu.memory_space<vmem>>, vector<128x128xf32>
    tpu.vector_store %arg6[%c0_11, %c0_12], %14 {strides = array<i32>} : memref<128x128xf32, #tpu.memory_space<vmem>>, vector<128x128xf32>,
    return
  }
  func.func @transform_0(%arg0: i32) -> (i32, i32) {
    %c0_i32 = arith.constant 0 : i32
    %c0_i32_0 = arith.constant 0 : i32
    return %arg0, %c0_i32 : i32, i32
  }
  func.func @transform_1(%arg0: i32) -> (i32, i32) {
    %c0_i32 = arith.constant 0 : i32
    %c0_i32_0 = arith.constant 0 : i32
    %c0_i32_1 = arith.constant 0 : i32
    return %c0_i32, %c0_i32_0 : i32, i32
  }
  func.func @transform_2(%arg0: i32) -> (i32, i32) {
    %c0_i32 = arith.constant 0 : i32
    %c0_i32_0 = arith.constant 0 : i32
    %c0_i32_1 = arith.constant 0 : i32
    return %c0_i32, %c0_i32_0 : i32, i32
  }
  func.func @transform_3(%arg0: i32) -> (i32, i32) {
    %c0_i32 = arith.constant 0 : i32
    %c0_i32_0 = arith.constant 0 : i32
    %c0_i32_1 = arith.constant 0 : i32
    return %c0_i32, %c0_i32_0 : i32, i32
  }
  func.func @transform_4(%arg0: i32) -> (i32, i32) {
    %c0_i32 = arith.constant 0 : i32
    %c0_i32_0 = arith.constant 0 : i32
    %c0_i32_1 = arith.constant 0 : i32
    return %c0_i32, %c0_i32_0 : i32, i32
  }
  func.func @transform_5(%arg0: i32) -> (i32, i32) {
    %c0_i32 = arith.constant 0 : i32
    %c0_i32_0 = arith.constant 0 : i32
    return %arg0, %c0_i32 : i32, i32
  }
}

</mosaic_0001>

<llo_original>
// kernel: _projector_padded.1
$region0: #{_projector_padded.1}
  #allocation0 [shape = 'u32[]', space=smem, size = 0x4, offset = 0x4, fixed_abs, tag = 'smem constant byte address 0x4 - core index']
  #allocation1 [shape = 'u32[144,128]{1,0:T(1,128)}', space=vmem, size = 0x12000, scoped, tag = 'internal scratch']
  %s0 = inlined_call_operand.vmem [shape: f32[128,128], index: 0, kind: input, shape index: {}]
  %s1 = inlined_call_operand.vmem [shape: bf16[128,128], index: 1, kind: input, shape index: {}]
  %s2 = inlined_call_operand.vmem [shape: f32[1,128], index: 2, kind: input, shape index: {}]
  %s3 = inlined_call_operand.vmem [shape: bf16[128,128], index: 3, kind: input, shape index: {}]
  %s4 = inlined_call_operand.vmem [shape: f32[1,128], index: 4, kind: input, shape index: {}]
  %s5 = inlined_call_operand.vmem [shape: f32[128,128], index: 5, kind: output, shape index: {}]
  %s6 = sld [smem:[#allocation0]]
  $region30: #{_projector_padded.1} parent=0
    _
  %s8 = ssub.s32 1, %s6
  %s9 = scalar_select 0, %s8, %s6
  // Predicated region
  $region2: #{_projector_padded.1} parent=0 // pred_check
    _
  $region3: #{_projector_padded.1} parent=0 // pred_check_branch
    %11 = sbr.rel (0) target = $region5
  $region4: #{_projector_padded.1} parent=0 // pred_region
    _
  $region5: #{_projector_padded.1} parent=0 // pred_fallthru
    _
  // Predicated region
  $region6: #{_projector_padded.1} parent=0 // pred_check
    _
  $region7: #{_projector_padded.1} parent=0 // pred_check_branch
    %13 = sbr.rel (0) target = $region9
  $region8: #{_projector_padded.1} parent=0 // pred_region
    _
  $region9: #{_projector_padded.1} parent=0 // pred_fallthru
    _
  // Predicated region
  $region10: #{_projector_padded.1} parent=0 // pred_check
    _
  $region11: #{_projector_padded.1} parent=0 // pred_check_branch
    %15 = sbr.rel (0) target = $region13
  $region12: #{_projector_padded.1} parent=0 // pred_region
    _
  $region13: #{_projector_padded.1} parent=0 // pred_fallthru
    _
  // Predicated region
  $region14: #{_projector_padded.1} parent=0 // pred_check
    _
  $region15: #{_projector_padded.1} parent=0 // pred_check_branch
    %17 = sbr.rel (0) target = $region17
  $region16: #{_projector_padded.1} parent=0 // pred_region
    _
  $region17: #{_projector_padded.1} parent=0 // pred_fallthru
    _
  // Predicated region
  $region18: #{_projector_padded.1} parent=0 // pred_check
    _
  $region19: #{_projector_padded.1} parent=0 // pred_check_branch
    %19 = sbr.rel (0) target = $region21
  $region20: #{_projector_padded.1} parent=0 // pred_region
    _
  $region21: #{_projector_padded.1} parent=0 // pred_fallthru
    _
  %v21 = vld [vmem:[%s0] sm:$0xff]
  %v22 = vld [vmem:[%s0 + $0x8] sm:$0xff]
  %v23 = vld [vmem:[%s0 + $0x10] sm:$0xff]
  %v24 = vld [vmem:[%s0 + $0x18] sm:$0xff]
  %v25 = vld [vmem:[%s0 + $0x20] sm:$0xff]
  %v26 = vld [vmem:[%s0 + $0x28] sm:$0xff]
  %v27 = vld [vmem:[%s0 + $0x30] sm:$0xff]
  %v28 = vld [vmem:[%s0 + $0x38] sm:$0xff]
  %v29 = vld [vmem:[%s0 + $0x40] sm:$0xff]
  %v30 = vld [vmem:[%s0 + $0x48] sm:$0xff]
  %v31 = vld [vmem:[%s0 + $0x50] sm:$0xff]
  %v32 = vld [vmem:[%s0 + $0x58] sm:$0xff]
  %v33 = vld [vmem:[%s0 + $0x60] sm:$0xff]
  %v34 = vld [vmem:[%s0 + $0x68] sm:$0xff]
  %v35 = vld [vmem:[%s0 + $0x70] sm:$0xff]
  %v36 = vld [vmem:[%s0 + $0x78] sm:$0xff]
  %v37 = vpack.c.bf16 %v22, %v21
  %v38 = vpack.c.bf16 %v24, %v23
  %v39 = vpack.c.bf16 %v26, %v25
  %v40 = vpack.c.bf16 %v28, %v27
  %v41 = vpack.c.bf16 %v30, %v29
  %v42 = vpack.c.bf16 %v32, %v31
  %v43 = vpack.c.bf16 %v34, %v33
  %v44 = vpack.c.bf16 %v36, %v35
  %v45 = vld [vmem:[%s1] sm:$0xf]
  %v46 = vld [vmem:[%s1 + $0x4] sm:$0xf]
  %v47 = vld [vmem:[%s1 + $0x8] sm:$0xf]
  %v48 = vld [vmem:[%s1 + $0xc] sm:$0xf]
  %v49 = vld [vmem:[%s1 + $0x10] sm:$0xf]
  %v50 = vld [vmem:[%s1 + $0x14] sm:$0xf]
  %v51 = vld [vmem:[%s1 + $0x18] sm:$0xf]
  %v52 = vld [vmem:[%s1 + $0x1c] sm:$0xf]
  %v53 = vld [vmem:[%s1 + $0x20] sm:$0xf]
  %v54 = vld [vmem:[%s1 + $0x24] sm:$0xf]
  %v55 = vld [vmem:[%s1 + $0x28] sm:$0xf]
  %v56 = vld [vmem:[%s1 + $0x2c] sm:$0xf]
  %v57 = vld [vmem:[%s1 + $0x30] sm:$0xf]
  %v58 = vld [vmem:[%s1 + $0x34] sm:$0xf]
  %v59 = vld [vmem:[%s1 + $0x38] sm:$0xf]
  %v60 = vld [vmem:[%s1 + $0x3c] sm:$0xf]
  %v61 = vld [vmem:[%s2] sm:$0x1]
  %v63 = vlaneseq
  %v64 = vshrl.u32 %v63, 7
  %v65 = vsub.s32 0, %v64
  %v66 = vrot.slane %v61, %v65
  %v84 = vunpack.c.l.b16 %v45
  %v85 = vunpack.c.l.b16 %v46
  %v86 = vunpack.c.l.b16 %v47
  %v87 = vunpack.c.l.b16 %v48
  %v88 = vunpack.c.l.b16 %v49
  %v89 = vunpack.c.l.b16 %v50
  %v90 = vunpack.c.l.b16 %v51
  %v91 = vunpack.c.l.b16 %v52
  %v92 = vunpack.c.l.b16 %v53
  %v93 = vunpack.c.l.b16 %v54
  %v94 = vunpack.c.l.b16 %v55
  %v95 = vunpack.c.l.b16 %v56
  %v96 = vunpack.c.l.b16 %v57
  %v97 = vunpack.c.l.b16 %v58
  %v98 = vunpack.c.l.b16 %v59
  %v99 = vunpack.c.l.b16 %v60
  %v100 = vpack.c.b16 %v85, %v84
  %v101 = vpack.c.b16 %v87, %v86
  %v102 = vpack.c.b16 %v89, %v88
  %v103 = vpack.c.b16 %v91, %v90
  %v104 = vpack.c.b16 %v93, %v92
  %v105 = vpack.c.b16 %v95, %v94
  %v106 = vpack.c.b16 %v97, %v96
  %v107 = vpack.c.b16 %v99, %v98
  %116 = vmatprep.subr.bf16.mxu0 0
  %117 = vmatpush1.bf16.msra.mxu0 %v100
  %118 = vmatprep.subr.bf16.mxu0 0
  %119 = vmatpush1.bf16.msra.mxu0 %v101
  %120 = vmatprep.subr.bf16.mxu0 0
  %121 = vmatpush1.bf16.msra.mxu0 %v102
  %122 = vmatprep.subr.bf16.mxu0 0
  %123 = vmatpush1.bf16.msra.mxu0 %v103
  %124 = vmatprep.subr.bf16.mxu0 0
  %125 = vmatpush1.bf16.msra.mxu0 %v104
  %126 = vmatprep.subr.bf16.mxu0 0
  %127 = vmatpush1.bf16.msra.mxu0 %v105
  %128 = vmatprep.subr.bf16.mxu0 0
  %129 = vmatpush1.bf16.msra.mxu0 %v106
  %130 = vmatprep.subr.bf16.mxu0 0
  %131 = vmatpush1.bf16.msra.mxu0 %v107
  %132 = vmatprep.subr.bf16.mxu0 0
  %133 = vmatpush1.bf16.msra.mxu0 0
  %134 = vmatprep.subr.bf16.mxu0 0
  %135 = vmatpush1.bf16.msra.mxu0 0
  %136 = vmatprep.subr.bf16.mxu0 0
  %137 = vmatpush1.bf16.msra.mxu0 0
  %138 = vmatprep.subr.bf16.mxu0 0
  %139 = vmatpush1.bf16.msra.mxu0 0
  %140 = vmatprep.subr.bf16.mxu0 0
  %141 = vmatpush1.bf16.msra.mxu0 0
  %142 = vmatprep.subr.bf16.mxu0 0
  %143 = vmatpush1.bf16.msra.mxu0 0
  %144 = vmatprep.subr.bf16.mxu0 0
  %145 = vmatpush1.bf16.msra.mxu0 0
  %146 = vmatprep.subr.bf16.mxu0 0
  %147 = vmatpush1.bf16.msra.mxu0 0
  %148 = vmatprep.mubr.bf16.mxu0 0
  %149 = vmatmul.mubr.bf16.gmra.mrb[0].mxu0 %v37
  %v150 = vpop.f32.mrb[0].mxu0
  %v151 = vadd.f32 %v66, %v150
  %v152 = vpop.f32.mrb[0].mxu0
  %v153 = vpop.f32.mrb[0].mxu0
  %v154 = vadd.f32 %v66, %v153
  %v155 = vpop.f32.mrb[0].mxu0
  %156 = vmatprep.mubr.bf16.mxu0 0
  %157 = vmatmul.mubr.bf16.gmra.mrb[0].mxu0 %v38
  %v158 = vpop.f32.mrb[0].mxu0
  %v159 = vadd.f32 %v66, %v158
  %v160 = vpop.f32.mrb[0].mxu0
  %v161 = vpop.f32.mrb[0].mxu0
  %v162 = vadd.f32 %v66, %v161
  %v163 = vpop.f32.mrb[0].mxu0
  %164 = vmatprep.mubr.bf16.mxu0 0
  %165 = vmatmul.mubr.bf16.gmra.mrb[0].mxu0 %v39
  %v166 = vpop.f32.mrb[0].mxu0
  %v167 = vadd.f32 %v66, %v166
  %v168 = vpop.f32.mrb[0].mxu0
  %v169 = vpop.f32.mrb[0].mxu0
  %v170 = vadd.f32 %v66, %v169
  %v171 = vpop.f32.mrb[0].mxu0
  %172 = vmatprep.mubr.bf16.mxu0 0
  %173 = vmatmul.mubr.bf16.gmra.mrb[0].mxu0 %v40
  %v174 = vpop.f32.mrb[0].mxu0
  %v175 = vadd.f32 %v66, %v174
  %v176 = vpop.f32.mrb[0].mxu0
  %v177 = vpop.f32.mrb[0].mxu0
  %v178 = vadd.f32 %v66, %v177
  %v179 = vpop.f32.mrb[0].mxu0
  %180 = vmatprep.mubr.bf16.mxu0 0
  %181 = vmatmul.mubr.bf16.gmra.mrb[0].mxu0 %v41
  %v182 = vpop.f32.mrb[0].mxu0
  %v183 = vadd.f32 %v66, %v182
  %v184 = vpop.f32.mrb[0].mxu0
  %v185 = vpop.f32.mrb[0].mxu0
  %v186 = vadd.f32 %v66, %v185
  %v187 = vpop.f32.mrb[0].mxu0
  %188 = vmatprep.mubr.bf16.mxu0 0
  %189 = vmatmul.mubr.bf16.gmra.mrb[0].mxu0 %v42
  %v190 = vpop.f32.mrb[0].mxu0
  %v191 = vadd.f32 %v66, %v190
  %v192 = vpop.f32.mrb[0].mxu0
  %v193 = vpop.f32.mrb[0].mxu0
  %v194 = vadd.f32 %v66, %v193
  %v195 = vpop.f32.mrb[0].mxu0
  %196 = vmatprep.mubr.bf16.mxu0 0
  %197 = vmatmul.mubr.bf16.gmra.mrb[0].mxu0 %v43
  %v198 = vpop.f32.mrb[0].mxu0
  %v199 = vadd.f32 %v66, %v198
  %v200 = vpop.f32.mrb[0].mxu0
  %v201 = vpop.f32.mrb[0].mxu0
  %v202 = vadd.f32 %v66, %v201
  %v203 = vpop.f32.mrb[0].mxu0
  %204 = vmatprep.mubr.bf16.mxu0 0
  %205 = vmatmul.mubr.bf16.gmra.mrb[0].mxu0 %v44
  %v206 = vpop.f32.mrb[0].mxu0
  %v207 = vadd.f32 %v66, %v206
  %v208 = vpop.f32.mrb[0].mxu0
  %v209 = vpop.f32.mrb[0].mxu0
  %v210 = vadd.f32 %v66, %v209
  %v211 = vpop.f32.mrb[0].mxu0
  %212 = vdwg.mxu0
  %v213 = vmax.f32 %v151, 0.0
  %v214 = vmax.f32 %v154, 0.0
  %v215 = vmax.f32 %v159, 0.0
  %v216 = vmax.f32 %v162, 0.0
  %v217 = vmax.f32 %v167, 0.0
  %v218 = vmax.f32 %v170, 0.0
  %v219 = vmax.f32 %v175, 0.0
  %v220 = vmax.f32 %v178, 0.0
  %v221 = vmax.f32 %v183, 0.0
  %v222 = vmax.f32 %v186, 0.0
  %v223 = vmax.f32 %v191, 0.0
  %v224 = vmax.f32 %v194, 0.0
  %v225 = vmax.f32 %v199, 0.0
  %v226 = vmax.f32 %v202, 0.0
  %v227 = vmax.f32 %v207, 0.0
  %v228 = vmax.f32 %v210, 0.0
  %v229 = vpack.c.bf16 %v214, %v213
  %v230 = vpack.c.bf16 %v216, %v215
  %v231 = vpack.c.bf16 %v218, %v217
  %v232 = vpack.c.bf16 %v220, %v219
  %v233 = vpack.c.bf16 %v222, %v221
  %v234 = vpack.c.bf16 %v224, %v223
  %v235 = vpack.c.bf16 %v226, %v225
  %v236 = vpack.c.bf16 %v228, %v227
  %v237 = vld [vmem:[%s3] sm:$0xf]
  %v238 = vld [vmem:[%s3 + $0x4] sm:$0xf]
  %v239 = vld [vmem:[%s3 + $0x8] sm:$0xf]
  %v240 = vld [vmem:[%s3 + $0xc] sm:$0xf]
  %v241 = vld [vmem:[%s3 + $0x10] sm:$0xf]
  %v242 = vld [vmem:[%s3 + $0x14] sm:$0xf]
  %v243 = vld [vmem:[%s3 + $0x18] sm:$0xf]
  %v244 = vld [vmem:[%s3 + $0x1c] sm:$0xf]
  %v245 = vld [vmem:[%s3 + $0x20] sm:$0xf]
  %v246 = vld [vmem:[%s3 + $0x24] sm:$0xf]
  %v247 = vld [vmem:[%s3 + $0x28] sm:$0xf]
  %v248 = vld [vmem:[%s3 + $0x2c] sm:$0xf]
  %v249 = vld [vmem:[%s3 + $0x30] sm:$0xf]
  %v250 = vld [vmem:[%s3 + $0x34] sm:$0xf]
  %v251 = vld [vmem:[%s3 + $0x38] sm:$0xf]
  %v252 = vld [vmem:[%s3 + $0x3c] sm:$0xf]
  %v253 = vld [vmem:[%s4] sm:$0x1]
  %v255 = vlaneseq
  %v256 = vshrl.u32 %v255, 7
  %v257 = vsub.s32 0, %v256
  %v258 = vrot.slane %v253, %v257
  %v276 = vunpack.c.l.b16 %v237
  %v277 = vunpack.c.l.b16 %v238
  %v278 = vunpack.c.l.b16 %v239
  %v279 = vunpack.c.l.b16 %v240
  %v280 = vunpack.c.l.b16 %v241
  %v281 = vunpack.c.l.b16 %v242
  %v282 = vunpack.c.l.b16 %v243
  %v283 = vunpack.c.l.b16 %v244
  %v284 = vunpack.c.l.b16 %v245
  %v285 = vunpack.c.l.b16 %v246
  %v286 = vunpack.c.l.b16 %v247
  %v287 = vunpack.c.l.b16 %v248
  %v288 = vunpack.c.l.b16 %v249
  %v289 = vunpack.c.l.b16 %v250
  %v290 = vunpack.c.l.b16 %v251
  %v291 = vunpack.c.l.b16 %v252
  %v292 = vpack.c.b16 %v277, %v276
  %v293 = vpack.c.b16 %v279, %v278
  %v294 = vpack.c.b16 %v281, %v280
  %v295 = vpack.c.b16 %v283, %v282
  %v296 = vpack.c.b16 %v285, %v284
  %v297 = vpack.c.b16 %v287, %v286
  %v298 = vpack.c.b16 %v289, %v288
  %v299 = vpack.c.b16 %v291, %v290
  %308 = vmatprep.subr.bf16.mxu0 0
  %309 = vmatpush1.bf16.msra.mxu0 %v292
  %310 = vmatprep.subr.bf16.mxu0 0
  %311 = vmatpush1.bf16.msra.mxu0 %v293
  %312 = vmatprep.subr.bf16.mxu0 0
  %313 = vmatpush1.bf16.msra.mxu0 %v294
  %314 = vmatprep.subr.bf16.mxu0 0
  %315 = vmatpush1.bf16.msra.mxu0 %v295
  %316 = vmatprep.subr.bf16.mxu0 0
  %317 = vmatpush1.bf16.msra.mxu0 %v296
  %318 = vmatprep.subr.bf16.mxu0 0
  %319 = vmatpush1.bf16.msra.mxu0 %v297
  %320 = vmatprep.subr.bf16.mxu0 0
  %321 = vmatpush1.bf16.msra.mxu0 %v298
  %322 = vmatprep.subr.bf16.mxu0 0
  %323 = vmatpush1.bf16.msra.mxu0 %v299
  %324 = vmatprep.subr.bf16.mxu0 0
  %325 = vmatpush1.bf16.msra.mxu0 0
  %326 = vmatprep.subr.bf16.mxu0 0
  %327 = vmatpush1.bf16.msra.mxu0 0
  %328 = vmatprep.subr.bf16.mxu0 0
  %329 = vmatpush1.bf16.msra.mxu0 0
  %330 = vmatprep.subr.bf16.mxu0 0
  %331 = vmatpush1.bf16.msra.mxu0 0
  %332 = vmatprep.subr.bf16.mxu0 0
  %333 = vmatpush1.bf16.msra.mxu0 0
  %334 = vmatprep.subr.bf16.mxu0 0
  %335 = vmatpush1.bf16.msra.mxu0 0
  %336 = vmatprep.subr.bf16.mxu0 0
  %337 = vmatpush1.bf16.msra.mxu0 0
  %338 = vmatprep.subr.bf16.mxu0 0
  %339 = vmatpush1.bf16.msra.mxu0 0
  %340 = vmatprep.mubr.bf16.mxu0 0
  %341 = vmatmul.mubr.bf16.gmra.mrb[0].mxu0 %v229
  %v342 = vpop.f32.mrb[0].mxu0
  %v343 = vadd.f32 %v258, %v342
  %v344 = vpop.f32.mrb[0].mxu0
  %v345 = vpop.f32.mrb[0].mxu0
  %v346 = vadd.f32 %v258, %v345
  %v347 = vpop.f32.mrb[0].mxu0
  %348 = vmatprep.mubr.bf16.mxu0 0
  %349 = vmatmul.mubr.bf16.gmra.mrb[0].mxu0 %v230
  %v350 = vpop.f32.mrb[0].mxu0
  %v351 = vadd.f32 %v258, %v350
  %v352 = vpop.f32.mrb[0].mxu0
  %v353 = vpop.f32.mrb[0].mxu0
  %v354 = vadd.f32 %v258, %v353
  %v355 = vpop.f32.mrb[0].mxu0
  %356 = vmatprep.mubr.bf16.mxu0 0
  %357 = vmatmul.mubr.bf16.gmra.mrb[0].mxu0 %v231
  %v358 = vpop.f32.mrb[0].mxu0
  %v359 = vadd.f32 %v258, %v358
  %v360 = vpop.f32.mrb[0].mxu0
  %v361 = vpop.f32.mrb[0].mxu0
  %v362 = vadd.f32 %v258, %v361
  %v363 = vpop.f32.mrb[0].mxu0
  %364 = vmatprep.mubr.bf16.mxu0 0
  %365 = vmatmul.mubr.bf16.gmra.mrb[0].mxu0 %v232
  %v366 = vpop.f32.mrb[0].mxu0
  %v367 = vadd.f32 %v258, %v366
  %v368 = vpop.f32.mrb[0].mxu0
  %v369 = vpop.f32.mrb[0].mxu0
  %v370 = vadd.f32 %v258, %v369
  %v371 = vpop.f32.mrb[0].mxu0
  %372 = vmatprep.mubr.bf16.mxu0 0
  %373 = vmatmul.mubr.bf16.gmra.mrb[0].mxu0 %v233
  %v374 = vpop.f32.mrb[0].mxu0
  %v375 = vadd.f32 %v258, %v374
  %v376 = vpop.f32.mrb[0].mxu0
  %v377 = vpop.f32.mrb[0].mxu0
  %v378 = vadd.f32 %v258, %v377
  %v379 = vpop.f32.mrb[0].mxu0
  %380 = vmatprep.mubr.bf16.mxu0 0
  %381 = vmatmul.mubr.bf16.gmra.mrb[0].mxu0 %v234
  %v382 = vpop.f32.mrb[0].mxu0
  %v383 = vadd.f32 %v258, %v382
  %v384 = vpop.f32.mrb[0].mxu0
  %v385 = vpop.f32.mrb[0].mxu0
  %v386 = vadd.f32 %v258, %v385
  %v387 = vpop.f32.mrb[0].mxu0
  %388 = vmatprep.mubr.bf16.mxu0 0
  %389 = vmatmul.mubr.bf16.gmra.mrb[0].mxu0 %v235
  %v390 = vpop.f32.mrb[0].mxu0
  %v391 = vadd.f32 %v258, %v390
  %v392 = vpop.f32.mrb[0].mxu0
  %v393 = vpop.f32.mrb[0].mxu0
  %v394 = vadd.f32 %v258, %v393
  %v395 = vpop.f32.mrb[0].mxu0
  %396 = vmatprep.mubr.bf16.mxu0 0
  %397 = vmatmul.mubr.bf16.gmra.mrb[0].mxu0 %v236
  %v398 = vpop.f32.mrb[0].mxu0
  %v399 = vadd.f32 %v258, %v398
  %v400 = vpop.f32.mrb[0].mxu0
  %v401 = vpop.f32.mrb[0].mxu0
  %v402 = vadd.f32 %v258, %v401
  %v403 = vpop.f32.mrb[0].mxu0
  %404 = vdwg.mxu0
  %405 = vst [vmem:[%s5] sm:$0xff] %v343
  %406 = vst [vmem:[%s5 + $0x8] sm:$0xff] %v346
  %407 = vst [vmem:[%s5 + $0x10] sm:$0xff] %v351
  %408 = vst [vmem:[%s5 + $0x18] sm:$0xff] %v354
  %409 = vst [vmem:[%s5 + $0x20] sm:$0xff] %v359
  %410 = vst [vmem:[%s5 + $0x28] sm:$0xff] %v362
  %411 = vst [vmem:[%s5 + $0x30] sm:$0xff] %v367
  %412 = vst [vmem:[%s5 + $0x38] sm:$0xff] %v370
  %413 = vst [vmem:[%s5 + $0x40] sm:$0xff] %v375
  %414 = vst [vmem:[%s5 + $0x48] sm:$0xff] %v378
  %415 = vst [vmem:[%s5 + $0x50] sm:$0xff] %v383
  %416 = vst [vmem:[%s5 + $0x58] sm:$0xff] %v386
  %417 = vst [vmem:[%s5 + $0x60] sm:$0xff] %v391
  %418 = vst [vmem:[%s5 + $0x68] sm:$0xff] %v394
  %419 = vst [vmem:[%s5 + $0x70] sm:$0xff] %v399
  %420 = vst [vmem:[%s5 + $0x78] sm:$0xff] %v402
  // Predicated region
  $region22: #{_projector_padded.1} parent=0 // pred_check
    _
  $region23: #{_projector_padded.1} parent=0 // pred_check_branch
    %422 = sbr.rel (0) target = $region25
  $region24: #{_projector_padded.1} parent=0 // pred_region
    _
  $region25: #{_projector_padded.1} parent=0 // pred_fallthru
    _
  // Predicated region
  $region26: #{_projector_padded.1} parent=0 // pred_check
    _
  $region27: #{_projector_padded.1} parent=0 // pred_check_branch
    %424 = sbr.rel (0) target = $region29
  $region28: #{_projector_padded.1} parent=0 // pred_region
    _
  $region29: #{_projector_padded.1} parent=0 // pred_fallthru
    _

</llo_original>
